<compile_context>
chip_gen: v7x
topology: tpu7x:2x2x1
jax: 0.10.0
libtpu: 0.0.40
codegen_flags: <defaults>
</compile_context>

<pallas_src>
import math

import jax
import jax.numpy as jnp
from jax import lax
from jax.experimental import pallas as pl
from jax.experimental.pallas import tpu as pltpu


# x @ y.T on 2-D operands: contract last dims of both (no data transpose, MXU).
_CONTRACT_LAST = (((1,), (1,)), ((), ()))


def _pick_row_tile(n_rows, batch, hidden, itemsize=4, target_bytes=2 << 20):
    """Rows per grid step over the flattened (L*B, H) encoder slab.

    Must be a multiple of B (so every block starts at b == 0 and the tiled
    query rows line up) and of 8 (sublane constraint), unless it equals the
    full row count.  ~2 MiB per block keeps 2x double-buffered encoder blocks
    far below the scoped-VMEM defaults on v5e (16 MiB) / v6e (32 MiB) and the
    64 MiB physical VMEM of v7x, while large enough to sit near HBM roofline.
    """
    if n_rows * hidden * itemsize <= target_bytes:
        return n_rows
    period = batch * 8 // math.gcd(batch, 8)            # lcm(B, 8)
    rt = (target_bytes // (hidden * itemsize)) // period * period
    rt = max(period, rt)
    return min(rt, n_rows)


# ----------------------------- kernels ------------------------------------


def _dot_score_kernel(q_ref, enc_ref, s_ref):
    # q_ref  : (Rt, H) per-row query (hidden, or hidden @ W), b-periodic tile,
    #          constant block index -> resident in VMEM, fetched once.
    # enc_ref: (Rt, H) native-layout encoder rows (the dominant HBM stream).
    # s_ref  : (Rt, 1) raw scores.
    # VPU multiply + XLU lane-reduce; no MXU / no relayout needed per row.
    s_ref[...] = jnp.sum(enc_ref[...] * q_ref[...], axis=-1,
                         keepdims=True).astype(s_ref.dtype)


def _concat_score_kernel(hpart_ref, v_ref, enc_ref, we_ref, s_ref):
    # energy_r = tanh(enc_r @ W_e.T + (hidden_b @ W_h.T + b))  (h-part hoisted)
    # score_r  = <v, energy_r>
    e = lax.dot_general(enc_ref[...], we_ref[...], _CONTRACT_LAST,
                        preferred_element_type=jnp.float32)        # (Rt, H) MXU
    energy = jnp.tanh(e + hpart_ref[...])                          # EUP
    s_ref[...] = jnp.sum(energy * v_ref[...], axis=-1,
                         keepdims=True).astype(s_ref.dtype)


def _softmax_kernel(s_ref, o_ref):
    # Numerically stable softmax over the last (lane) axis of the tiny (B, L)
    # score slab (B*L*4 bytes; negligible vs. the encoder stream).
    s = s_ref[...]
    m = jnp.max(s, axis=-1, keepdims=True)
    e = jnp.exp(s - m)
    o_ref[...] = (e * pl.reciprocal(jnp.sum(e, axis=-1, keepdims=True),
                                    approx=False)).astype(o_ref.dtype)


# ----------------------------- wrapper -------------------------------------


def attn_forward(method, hidden, encoder_outputs, params=None):
    """Matches Attn(method, hidden_size).forward(hidden, encoder_outputs).

    hidden:          (1, B, H) float32
    encoder_outputs: (L, B, H) float32
    returns:         (B, 1, L) float32
    """
    _, B, H = hidden.shape
    L = encoder_outputs.shape[0]
    R = L * B

    # Free, contiguous collapses -- no HBM round trip of the big tensor.
    enc2d = jnp.reshape(encoder_outputs, (R, H))      # row r -> (l=r//B, b=r%B)
    h2d = jnp.reshape(hidden, (B, H))

    rt = _pick_row_tile(R, B, H)
    grid = (pl.cdiv(R, rt),)                          # many steps for real L*B
    reps = rt // B                                    # rt is a multiple of B

    enc_spec = pl.BlockSpec((rt, H), lambda i: (i, 0))
    qrow_spec = pl.BlockSpec((rt, H), lambda i: (0, 0))   # resident b-periodic tile
    out_spec = pl.BlockSpec((rt, 1), lambda i: (i, 0))
    s_shape = jax.ShapeDtypeStruct((R, 1), jnp.float32)
    cparams = pltpu.CompilerParams(
        dimension_semantics=("parallel",),            # megacore / v7x 2-TC split
        vmem_limit_bytes=48 * 1024 * 1024)            # above every scoped default,
                                                      # below v7x 64 MiB physical

    offset = None  # per-batch additive constant (general's <hidden, bias>)

    if method == "dot":
        q_tile = jnp.tile(h2d, (reps, 1))                        # (rt, H), tiny
        scores_flat = pl.pallas_call(
            _dot_score_kernel, grid=grid,
            in_specs=[qrow_spec, enc_spec], out_specs=out_spec,
            out_shape=s_shape, compiler_params=cparams,
        )(q_tile, enc2d)

    elif method == "general":
        w = params["w"]                               # (H, H), torch (out, in)
        bias = params["b"]
        # Hoisted hidden-side work (one tiny matmul, outside the grid):
        #   score_lb = <hidden_b @ W, enc_lb> + <hidden_b, bias>
        q = h2d @ w                                                # (B, H)
        offset = jnp.sum(h2d * bias[None, :], axis=-1)             # (B,)
        q_tile = jnp.tile(q, (reps, 1))
        scores_flat = pl.pallas_call(
            _dot_score_kernel, grid=grid,
            in_specs=[qrow_spec, enc_spec], out_specs=out_spec,
            out_shape=s_shape, compiler_params=cparams,
        )(q_tile, enc2d)

    elif method == "concat":
        w = params["w"]                               # (H, 2H): [W_h | W_e]
        bias = params["b"]
        v = params["v"]
        w_h, w_e = w[:, :H], w[:, H:]
        hpart = h2d @ w_h.T + bias[None, :]           # (B, H), hoisted + bias folded
        hpart_tile = jnp.tile(hpart, (reps, 1))       # (rt, H), b-periodic
        scores_flat = pl.pallas_call(
            _concat_score_kernel, grid=grid,
            in_specs=[qrow_spec,                                  # hpart_tile
                      pl.BlockSpec((1, H), lambda i: (0, 0)),     # v
                      enc_spec,                                   # encoder rows
                      pl.BlockSpec((H, H), lambda i: (0, 0))],    # W_e (resident)
            out_specs=out_spec,
            out_shape=s_shape, compiler_params=cparams,
        )(hpart_tile, v.reshape(1, H), enc2d, w_e)

    else:
        raise ValueError(method, "is not an appropriate attention method.")

    # Everything below operates on the tiny (L*B) score vector only.
    scores = jnp.reshape(scores_flat, (L, B))
    if offset is not None:
        scores = scores + offset[None, :]
    scores_bl = scores.T                              # (B, L) -- negligible bytes

    attn = pl.pallas_call(
        _softmax_kernel, grid=(1,),
        in_specs=[pl.BlockSpec((B, L), lambda i: (0, 0))],
        out_specs=pl.BlockSpec((B, L), lambda i: (0, 0)),
        out_shape=jax.ShapeDtypeStruct((B, L), jnp.float32),
    )(scores_bl)
    return attn[:, None, :]                           # (B, 1, L), free reshape


# ----------------------------- reference (pure JAX) ------------------------


def attn_reference(method, hidden, encoder_outputs, params=None):
    if method == "dot":
        scores = jnp.sum(hidden * encoder_outputs, axis=2)          # (L, B)
    elif method == "general":
        energy = encoder_outputs @ params["w"].T + params["b"]
        scores = jnp.sum(hidden * energy, axis=2)
    elif method == "concat":
        L = encoder_outputs.shape[0]
        h_exp = jnp.broadcast_to(hidden, (L,) + hidden.shape[1:])
        cat = jnp.concatenate([h_exp, encoder_outputs], axis=2)
        energy = jnp.tanh(cat @ params["w"].T + params["b"])
        scores = jnp.sum(params["v"] * energy, axis=2)
    scores = scores.T                                                # (B, L)
    return jax.nn.softmax(scores, axis=1)[:, None, :]                # (B, 1, L)


# ----------------------------- main -----------------------------------------


if __name__ == "__main__":
    B, L, H = 2, 8, 32                      # batch, seq, hidden_size

    key = jax.random.PRNGKey(0)
    k_hid, k_enc, k_wg, k_bg, k_wc, k_bc, k_v = jax.random.split(key, 7)

    hidden = jax.random.normal(k_hid, (1, B, H), dtype=jnp.float32)
    encoder_outputs = jax.random.normal(k_enc, (L, B, H), dtype=jnp.float32)

    # Deterministic parameter init (shapes from torch.nn.Linear / Parameter).
    params_general = {
        "w": jax.random.normal(k_wg, (H, H), dtype=jnp.float32) * 0.1,
        "b": jax.random.normal(k_bg, (H,), dtype=jnp.float32) * 0.1,
    }
    params_concat = {
        "w": jax.random.normal(k_wc, (H, 2 * H), dtype=jnp.float32) * 0.1,
        "b": jax.random.normal(k_bc, (H,), dtype=jnp.float32) * 0.1,
        "v": jax.random.normal(k_v, (H,), dtype=jnp.float32) * 0.1,
    }

    configs = [
        ("dot", None),
        ("general", params_general),
        ("concat", params_concat),
    ]

    for method, params in configs:
        out = attn_forward(method, hidden, encoder_outputs, params)
        out = jax.block_until_ready(out)
        ref = attn_reference(method, hidden, encoder_outputs, params)
        assert out.shape == (B, 1, L), (method, out.shape)
        assert jnp.allclose(out, ref, atol=2e-5, rtol=2e-5), method
        # attention weights along the last axis sum to 1
        assert jnp.allclose(jnp.sum(out, axis=-1), 1.0, atol=1e-5), method

    print("KERNEL_OK")
</pallas_src>

<mosaic_0001>
module attributes {stable_mosaic.version = 11 : i64} {
  func.func @_dot_score_kernel(%arg0: i32, %arg1: memref<16x32xf32, #tpu.memory_space<vmem>>, %arg2: memref<16x32xf32, #tpu.memory_space<vmem>>, %arg3: memref<16x1xf32, #tpu.memory_space<vmem>>) attributes {dimension_semantics = [#tpu.dimension_semantics<parallel>], iteration_bounds = array<i64: 1>, scalar_prefetch = 0 : i64, scratch_operands = 0 : i64, tpu.core_type = #tpu.core_type<tc>, window_params = [{pipeline_mode = #tpu.pipeline_mode<synchronous>, transform_indices = @transform_0, window_bounds = array<i64: 16, 32>}, {transform_indices = @transform_1, window_bounds = array<i64: 16, 32>}, {transform_indices = @transform_2, window_bounds = array<i64: 16, 1>}]} {
    %c0 = arith.constant 0 : index
    %c0_0 = arith.constant 0 : index
    %0 = vector.load %arg2[%c0, %c0_0] : memref<16x32xf32, #tpu.memory_space<vmem>>, vector<16x32xf32>
    %c0_1 = arith.constant 0 : index
    %c0_2 = arith.constant 0 : index
    %1 = vector.load %arg1[%c0_1, %c0_2] : memref<16x32xf32, #tpu.memory_space<vmem>>, vector<16x32xf32>
    %2 = arith.mulf %0, %1 : vector<16x32xf32>
    %cst = arith.constant dense<0.000000e+00> : vector<16xf32>
    %3 = vector.multi_reduction <add>, %2, %cst [1] : vector<16x32xf32> to vector<16xf32>
    %4 = vector.shape_cast %3 : vector<16xf32> to vector<16x1xf32>
    %c0_3 = arith.constant 0 : index
    %c0_4 = arith.constant 0 : index
    %5 = vector.load %arg3[%c0_3, %c0_4] : memref<16x1xf32, #tpu.memory_space<vmem>>, vector<16x1xf32>
    tpu.vector_store %arg3[%c0_3, %c0_4], %4 {strides = array<i32>} : memref<16x1xf32, #tpu.memory_space<vmem>>, vector<16x1xf32>,
    return
  }
  func.func @transform_0(%arg0: i32) -> (i32, i32) {
    %c0_i32 = arith.constant 0 : i32
    %c0_i32_0 = arith.constant 0 : i32
    %c0_i32_1 = arith.constant 0 : i32
    return %c0_i32, %c0_i32_0 : i32, i32
  }
  func.func @transform_1(%arg0: i32) -> (i32, i32) {
    %c0_i32 = arith.constant 0 : i32
    %c0_i32_0 = arith.constant 0 : i32
    return %arg0, %c0_i32 : i32, i32
  }
  func.func @transform_2(%arg0: i32) -> (i32, i32) {
    %c0_i32 = arith.constant 0 : i32
    %c0_i32_0 = arith.constant 0 : i32
    return %arg0, %c0_i32 : i32, i32
  }
}

</mosaic_0001>

<llo_original>
// kernel: tpu_custom_call.1
$region0: #{tpu_custom_call.1}
  #allocation0 [shape = 'u32[]', space=smem, size = 0x4, offset = 0x4, fixed_abs, tag = 'smem constant byte address 0x4 - core index']
  #allocation1 [shape = 'u32[144,128]{1,0:T(1,128)}', space=vmem, size = 0x12000, scoped, tag = 'internal scratch']
  %s0 = inlined_call_operand.hbm [shape: f32[16,32], index: 0, kind: input, shape index: {}]
  %s1 = inlined_call_operand.hbm [shape: f32[16,32], index: 1, kind: input, shape index: {}]
  %s2 = inlined_call_operand.vmem [shape: f32[16,1], index: 2, kind: output, shape index: {}]
  %s3 = sld [smem:[#allocation0]]
  $region26: #{tpu_custom_call.1} parent=0
    _
  %s5 = ssub.s32 1, %s3
  %s6 = scalar_select 0, %s5, %s3
  $region1: #{tpu_custom_call.1} parent=0
    #allocation2 [shape = 'u8[8192]{0}', space=vmem, size = 0x2000, scoped, tag = 'input window, operand 0, single buffered']
    #allocation3 [shape = 's32[1]{0}', space=sflag, size = 0x4, scoped, tag = 'scoped memory for tpu_custom_call.1']
    #allocation4 [shape = 'u8[8192]{0}', space=vmem, size = 0x2000, scoped, tag = 'input window, operand 1, single buffered']
    #allocation5 [shape = 's32[1]{0}', space=sflag, size = 0x4, scoped, tag = 'scoped memory for tpu_custom_call.1']
    %7 = vsyncpa [#allocation3], 0
    %8 = vsyncpa [#allocation5], 0
    // Predicated region
    $region2: #{tpu_custom_call.1} parent=1 // pred_check
      _
    $region3: #{tpu_custom_call.1} parent=1 // pred_check_branch
      %10 = sbr.rel (0) target = $region5
    $region4: #{tpu_custom_call.1} parent=1 // pred_region
      %s12 = ssub.s32 256, 256
      %13 = vsyncadd [#allocation3], %s12
      %s14 = sshll.u32 [#allocation2], 4
      %s15 = int_to_ptr.vmem [resolvable:$true] %s14
      %20 = dma.hbm_to_vmem [thread:$0]  %s0, 256, %s15, [#allocation3], 128, 128, 8
    $region5: #{tpu_custom_call.1} parent=1 // pred_fallthru
      _
    // Predicated region
    $region6: #{tpu_custom_call.1} parent=1 // pred_check
      _
    $region7: #{tpu_custom_call.1} parent=1 // pred_check_branch
      %22 = sbr.rel (0) target = $region9
    $region8: #{tpu_custom_call.1} parent=1 // pred_region
      %s24 = ssub.s32 256, 256
      %25 = vsyncadd [#allocation5], %s24
      %s26 = sshll.u32 [#allocation4], 4
      %s27 = int_to_ptr.vmem [resolvable:$true] %s26
      %32 = dma.hbm_to_vmem [thread:$0]  %s1, 256, %s27, [#allocation5], 128, 128, 8
    $region9: #{tpu_custom_call.1} parent=1 // pred_fallthru
      _
    // Predicated region
    $region10: #{tpu_custom_call.1} parent=1 // pred_check
      _
    $region11: #{tpu_custom_call.1} parent=1 // pred_check_branch
      %34 = sbr.rel (0) target = $region13
    $region12: #{tpu_custom_call.1} parent=1 // pred_region
      %35 = dma.done [#allocation3], 256
    $region13: #{tpu_custom_call.1} parent=1 // pred_fallthru
      _
    // Predicated region
    $region14: #{tpu_custom_call.1} parent=1 // pred_check
      _
    $region15: #{tpu_custom_call.1} parent=1 // pred_check_branch
      %37 = sbr.rel (0) target = $region17
    $region16: #{tpu_custom_call.1} parent=1 // pred_region
      %38 = dma.done [#allocation5], 256
    $region17: #{tpu_custom_call.1} parent=1 // pred_fallthru
      _
    %v39 = vld [vmem:[#allocation4] sm:$0xff]
    %v40 = vld [vmem:[#allocation4 + $0x8] sm:$0xff]
    %v41 = vld [vmem:[#allocation2] sm:$0xff]
    %v42 = vld [vmem:[#allocation2 + $0x8] sm:$0xff]
    %v43 = vmul.f32 %v39, %v41
    %v44 = vmul.f32 %v40, %v42
    %vm45 = vcmask 261120
    %v46 = vsel %vm45, %v43, 0.0
    %47 = vadd.xlane.f32.xlu0 %v46
    %v48 = vpop.xlane.xlu0 %47
    %v49 = vsel %vm45, %v44, 0.0
    %50 = vadd.xlane.f32.xlu0 %v49
    %v51 = vpop.xlane.xlu0 %50
    %vm52 = vcmask 7168
    %53 = vst.msk [vmem:[%s2] sm:$0xff] %vm52, %v48
    %54 = vst.msk [vmem:[%s2 + $0x8] sm:$0xff] %vm52, %v51
    // Predicated region
    $region18: #{tpu_custom_call.1} parent=1 // pred_check
      _
    $region19: #{tpu_custom_call.1} parent=1 // pred_check_branch
      %56 = sbr.rel (0) target = $region21
    $region20: #{tpu_custom_call.1} parent=1 // pred_region
      _
    $region21: #{tpu_custom_call.1} parent=1 // pred_fallthru
      _
    // Predicated region
    $region22: #{tpu_custom_call.1} parent=1 // pred_check
      _
    $region23: #{tpu_custom_call.1} parent=1 // pred_check_branch
      %58 = sbr.rel (0) target = $region25
    $region24: #{tpu_custom_call.1} parent=1 // pred_region
      _
    $region25: #{tpu_custom_call.1} parent=1 // pred_fallthru
      _
    %59 = vsyncpa [#allocation3], 1
    %60 = vsyncpa [#allocation5], 1

</llo_original>
